<compile_context>
chip_gen: v6e
topology: v6e:2x2x1
jax: 0.10.0
libtpu: 0.0.40
codegen_flags: <defaults>
</compile_context>

<pallas_src>
import functools

import jax
import jax.numpy as jnp
from jax import lax
from jax.experimental import pallas as pl
from jax.experimental.pallas import tpu as pltpu


def _l1_sobel_kernel(pred_ref, tgt_ref, out_ref,
                     sum_ref, gsum_ref, gmax_ref,
                     *, chan, rem_last):
    i = pl.program_id(0)
    tn, H, Wc = pred_ref.shape
    C = chan

    @pl.when(i == 0)
    def _():
        sum_ref[...] = jnp.zeros_like(sum_ref)
        gsum_ref[...] = jnp.zeros_like(gsum_ref)
        gmax_ref[...] = jnp.zeros_like(gmax_ref)   # grad >= 0 -> 0 is a valid identity

    p = pred_ref[...].astype(jnp.float32)
    t = tgt_ref[...].astype(jnp.float32)
    err = jnp.abs(p - t)

    # Edge masks implementing conv2d's zero "padding=1" (the W padding is C lanes
    # wide because the lane axis is the flattened W*C axis).  (H, Wc) masks only:
    # their cost is amortised over the image (block) axis.
    row = lax.broadcasted_iota(jnp.int32, (H, Wc), 0)
    col = lax.broadcasted_iota(jnp.int32, (H, Wc), 1)
    m_top = (row > 0).astype(jnp.float32)          # the row above exists
    m_bot = (row < H - 1).astype(jnp.float32)      # the row below exists
    m_lft = (col >= C).astype(jnp.float32)         # the pixel to the left exists
    m_rgt = (col < Wc - C).astype(jnp.float32)     # the pixel to the right exists

    # Zero-padded neighbour shifts via XLU rolls: roll(x, s, a)[i] = x[(i - s) % n].
    up = lambda x: pltpu.roll(x, 1 % H, 1) * m_top           # x[y-1]
    dn = lambda x: pltpu.roll(x, (H - 1) % H, 1) * m_bot     # x[y+1]
    lf = lambda x: pltpu.roll(x, C % Wc, 2) * m_lft          # x[w-1]
    rt = lambda x: pltpu.roll(x, (Wc - C) % Wc, 2) * m_rgt   # x[w+1]

    # Separable Sobel (cross-correlation == F.conv2d with padding=1):
    #   sobel_x = col[1,2,1] (x) row[1,0,-1],  sobel_y = col[1,0,-1] (x) row[1,2,1]
    v = up(t) + 2.0 * t + dn(t)       # vertical [1,2,1]
    gx = lf(v) - rt(v)
    hs = lf(t) + 2.0 * t + rt(t)      # horizontal [1,2,1]
    gy = up(hs) - dn(hs)
    grad = jnp.sqrt(gx * gx + gy * gy)
    gerr = grad * err

    def accumulate(e, ge, g):
        # Reduce only over the image axis (cheap cross-vreg VPU adds); the
        # cross-lane tree reduce happens once, in the final step below.
        sum_ref[...] += jnp.sum(e, axis=0)
        gsum_ref[...] += jnp.sum(ge, axis=0)
        gmax_ref[...] = jnp.maximum(gmax_ref[...], jnp.max(g, axis=0))

    last = pl.num_programs(0) - 1
    if rem_last == 0:
        accumulate(err, gerr, grad)
    else:
        # Only the final block overhangs N; drop its trailing (invalid) images with
        # a static leading-dim slice so stale data never enters any reduction.
        @pl.when(i != last)
        def _():
            accumulate(err, gerr, grad)

        @pl.when(i == last)
        def _():
            accumulate(err[:rem_last], gerr[:rem_last], grad[:rem_last])

    @pl.when(i == last)
    def _():
        out_ref[0] = jnp.sum(sum_ref[...])
        out_ref[1] = jnp.sum(gsum_ref[...])
        out_ref[2] = jnp.max(gmax_ref[...])


def _vmem_capacity_bytes():
    try:
        return int(pltpu.get_tpu_info().vmem_capacity_bytes)
    except Exception:
        return 64 * 1024 * 1024   # conservative (v7x-sized) fallback


@functools.partial(jax.jit, static_argnames=("alpha", "beta", "tile_n"))
def l1_loss(pred, target, alpha=1.0, beta=1.0, tile_n=None):
    B, M, H, W, C = pred.shape
    assert pred.shape == target.shape, "Input shapes must match"

    N = B * M
    Wc = W * C

    # Free reshapes (no transpose, no copy): lane axis = W*C.
    p = pred.reshape(N, H, Wc)
    t = target.reshape(N, H, Wc)

    itemsize = pred.dtype.itemsize
    vmem_cap = _vmem_capacity_bytes()
    # Generation-aware VMEM cap: ~48 MiB on v7x (64 MiB/TC), ~112 MiB on v5e/v6e.
    vmem_limit = int(min(max(vmem_cap - 16 * 1024 * 1024, 32 * 1024 * 1024),
                         112 * 1024 * 1024))
    # Budget model per image in a block: 2 inputs x 2 pipeline buffers in the
    # native dtype + ~8 block-sized f32 temporaries inside the kernel body.
    per_image_bytes = H * Wc * (4 * itemsize + 8 * 4)
    if tile_n is None:
        budget = (3 * vmem_limit) // 4
        tile = max(1, min(N, budget // max(1, per_image_bytes)))
    else:
        tile = max(1, min(int(tile_n), N))

    grid_n = pl.cdiv(N, tile)
    rem_last = N % tile

    n_elems = N * H * Wc
    cost = pl.CostEstimate(
        flops=30 * n_elems,                 # abs/sub + separable sobel + weighting
        transcendentals=n_elems,            # one sqrt per element
        bytes_accessed=2 * n_elems * itemsize + 3 * 4,
    )

    sums = pl.pallas_call(
        functools.partial(_l1_sobel_kernel, chan=C, rem_last=rem_last),
        out_shape=jax.ShapeDtypeStruct((3,), jnp.float32),
        grid_spec=pltpu.PrefetchScalarGridSpec(
            num_scalar_prefetch=0,
            grid=(grid_n,),
            in_specs=[
                pl.BlockSpec((tile, H, Wc), lambda i: (i, 0, 0)),
                pl.BlockSpec((tile, H, Wc), lambda i: (i, 0, 0)),
            ],
            out_specs=pl.BlockSpec(memory_space=pltpu.MemorySpace.SMEM),
            scratch_shapes=[
                pltpu.VMEM((H, Wc), jnp.float32),   # running sum |err|
                pltpu.VMEM((H, Wc), jnp.float32),   # running sum grad * |err|
                pltpu.VMEM((H, Wc), jnp.float32),   # running max grad
            ],
        ),
        compiler_params=pltpu.CompilerParams(
            dimension_semantics=("arbitrary",),     # reduction axis
            vmem_limit_bytes=vmem_limit,
        ),
        cost_estimate=cost,
    )(p, t)

    sum_err, sum_gerr, max_g = sums[0], sums[1], sums[2]
    denom = jnp.float32(n_elems)
    return (alpha * sum_err / denom
            + beta * (sum_gerr / denom) / (max_g + jnp.float32(1e-10)))


def _l1_loss_reference(pred, target, alpha=1.0, beta=1.0):
    """Pure-JAX reference (mirrors the torch permute/conv2d path)."""
    B, M, H, W, C = pred.shape
    p = jnp.transpose(pred, (0, 4, 1, 2, 3)).reshape(B * C * M, H, W).astype(jnp.float32)
    t = jnp.transpose(target, (0, 4, 1, 2, 3)).reshape(B * C * M, H, W).astype(jnp.float32)
    err = jnp.abs(p - t)
    tp = jnp.pad(t, ((0, 0), (1, 1), (1, 1)))
    c0 = tp[:, 0:H, 0:W]; c1 = tp[:, 0:H, 1:W + 1]; c2 = tp[:, 0:H, 2:W + 2]
    c3 = tp[:, 1:H + 1, 0:W]; c5 = tp[:, 1:H + 1, 2:W + 2]
    c6 = tp[:, 2:H + 2, 0:W]; c7 = tp[:, 2:H + 2, 1:W + 1]; c8 = tp[:, 2:H + 2, 2:W + 2]
    gx = c0 - c2 + 2 * c3 - 2 * c5 + c6 - c8
    gy = c0 + 2 * c1 + c2 - c6 - 2 * c7 - c8
    grad = jnp.sqrt(gx * gx + gy * gy)
    info_w = grad / (grad.max() + 1e-10)
    return jnp.mean((alpha + beta * info_w) * err)


if __name__ == "__main__":
    key = jax.random.PRNGKey(0)
    k1, k2 = jax.random.split(key)
    B, M, H, W, C = 2, 3, 16, 16, 2
    pred = jax.random.normal(k1, (B, M, H, W, C), dtype=jnp.float32)
    target = jax.random.normal(k2, (B, M, H, W, C), dtype=jnp.float32)

    # 1) default (single big block)
    ref = _l1_loss_reference(pred, target, alpha=1.0, beta=1.0)
    loss = jax.block_until_ready(l1_loss(pred, target, alpha=1.0, beta=1.0))
    assert jnp.allclose(loss, ref, rtol=1e-4, atol=1e-5), (loss, ref)

    # 2) forced small tile -> multi-step grid + ragged-tail (last-step slice) path
    ref2 = _l1_loss_reference(pred, target, alpha=0.5, beta=2.0)
    loss2 = jax.block_until_ready(l1_loss(pred, target, alpha=0.5, beta=2.0, tile_n=4))
    assert jnp.allclose(loss2, ref2, rtol=1e-4, atol=1e-5), (loss2, ref2)

    # 3) bf16 inputs -> exercises the in-kernel cast (no wrapper upcast copy)
    pred_bf = pred.astype(jnp.bfloat16)
    targ_bf = target.astype(jnp.bfloat16)
    ref_bf = _l1_loss_reference(pred_bf, targ_bf, alpha=1.0, beta=1.0)
    loss_bf = jax.block_until_ready(l1_loss(pred_bf, targ_bf, alpha=1.0, beta=1.0))
    assert jnp.allclose(loss_bf, ref_bf, rtol=1e-4, atol=1e-4), (loss_bf, ref_bf)

    print("KERNEL_OK")
</pallas_src>

<mosaic_0001>
module attributes {stable_mosaic.version = 11 : i64} {
  func.func @_l1_sobel_kernel(%arg0: i32, %arg1: memref<6x16x32xf32, #tpu.memory_space<vmem>>, %arg2: memref<6x16x32xf32, #tpu.memory_space<vmem>>, %arg3: memref<3xf32, #tpu.memory_space<smem>>, %arg4: memref<16x32xf32, #tpu.memory_space<vmem>>, %arg5: memref<16x32xf32, #tpu.memory_space<vmem>>, %arg6: memref<16x32xf32, #tpu.memory_space<vmem>>) attributes {dimension_semantics = [#tpu.dimension_semantics<arbitrary>], iteration_bounds = array<i64: 1>, scalar_prefetch = 0 : i64, scratch_operands = 3 : i64, tpu.core_type = #tpu.core_type<tc>, window_params = [{transform_indices = @transform_0, window_bounds = array<i64: 6, 16, 32>}, {transform_indices = @transform_1, window_bounds = array<i64: 6, 16, 32>}, {transform_indices = @transform_2, window_bounds = array<i64: 3>}]} {
    %c0_i32 = arith.constant 0 : i32
    %0 = arith.cmpi eq, %arg0, %c0_i32 : i32
    %1 = arith.extui %0 : i1 to i32
    %c0_i32_0 = arith.constant 0 : i32
    %2 = arith.cmpi ne, %1, %c0_i32_0 : i32
    scf.if %2 {
      %cst_32 = arith.constant 0.000000e+00 : f32
      %87 = vector.broadcast %cst_32 : f32 to vector<16x32xf32>
      %c0_33 = arith.constant 0 : index
      %c0_34 = arith.constant 0 : index
      %88 = vector.load %arg4[%c0_33, %c0_34] : memref<16x32xf32, #tpu.memory_space<vmem>>, vector<16x32xf32>
      tpu.vector_store %arg4[%c0_33, %c0_34], %87 {strides = array<i32>} : memref<16x32xf32, #tpu.memory_space<vmem>>, vector<16x32xf32>,
      %cst_35 = arith.constant 0.000000e+00 : f32
      %89 = vector.broadcast %cst_35 : f32 to vector<16x32xf32>
      %c0_36 = arith.constant 0 : index
      %c0_37 = arith.constant 0 : index
      %90 = vector.load %arg5[%c0_36, %c0_37] : memref<16x32xf32, #tpu.memory_space<vmem>>, vector<16x32xf32>
      tpu.vector_store %arg5[%c0_36, %c0_37], %89 {strides = array<i32>} : memref<16x32xf32, #tpu.memory_space<vmem>>, vector<16x32xf32>,
      %cst_38 = arith.constant 0.000000e+00 : f32
      %91 = vector.broadcast %cst_38 : f32 to vector<16x32xf32>
      %c0_39 = arith.constant 0 : index
      %c0_40 = arith.constant 0 : index
      %92 = vector.load %arg6[%c0_39, %c0_40] : memref<16x32xf32, #tpu.memory_space<vmem>>, vector<16x32xf32>
      tpu.vector_store %arg6[%c0_39, %c0_40], %91 {strides = array<i32>} : memref<16x32xf32, #tpu.memory_space<vmem>>, vector<16x32xf32>,
    } else {
    }
    %c0 = arith.constant 0 : index
    %c0_1 = arith.constant 0 : index
    %c0_2 = arith.constant 0 : index
    %3 = vector.load %arg1[%c0, %c0_1, %c0_2] : memref<6x16x32xf32, #tpu.memory_space<vmem>>, vector<6x16x32xf32>
    %c0_3 = arith.constant 0 : index
    %c0_4 = arith.constant 0 : index
    %c0_5 = arith.constant 0 : index
    %4 = vector.load %arg2[%c0_3, %c0_4, %c0_5] : memref<6x16x32xf32, #tpu.memory_space<vmem>>, vector<6x16x32xf32>
    %5 = arith.subf %3, %4 : vector<6x16x32xf32>
    %6 = math.absf %5 : vector<6x16x32xf32>
    %7 = tpu.iota {dimensions = array<i32: 0>} : vector<16x32xi32>
    %8 = tpu.iota {dimensions = array<i32: 1>} : vector<16x32xi32>
    %c0_i32_6 = arith.constant 0 : i32
    %9 = vector.broadcast %c0_i32_6 : i32 to vector<16x32xi32>
    %10 = arith.cmpi sgt, %7, %9 : vector<16x32xi32>
    %11 = arith.extui %10 : vector<16x32xi1> to vector<16x32xi32>
    %12 = arith.sitofp %11 : vector<16x32xi32> to vector<16x32xf32>
    %c15_i32 = arith.constant 15 : i32
    %13 = vector.broadcast %c15_i32 : i32 to vector<16x32xi32>
    %14 = arith.cmpi slt, %7, %13 : vector<16x32xi32>
    %15 = arith.extui %14 : vector<16x32xi1> to vector<16x32xi32>
    %16 = arith.sitofp %15 : vector<16x32xi32> to vector<16x32xf32>
    %c2_i32 = arith.constant 2 : i32
    %17 = vector.broadcast %c2_i32 : i32 to vector<16x32xi32>
    %18 = arith.cmpi sge, %8, %17 : vector<16x32xi32>
    %19 = arith.extui %18 : vector<16x32xi1> to vector<16x32xi32>
    %20 = arith.sitofp %19 : vector<16x32xi32> to vector<16x32xf32>
    %c30_i32 = arith.constant 30 : i32
    %21 = vector.broadcast %c30_i32 : i32 to vector<16x32xi32>
    %22 = arith.cmpi slt, %8, %21 : vector<16x32xi32>
    %23 = arith.extui %22 : vector<16x32xi1> to vector<16x32xi32>
    %24 = arith.sitofp %23 : vector<16x32xi32> to vector<16x32xf32>
    %c1_i32 = arith.constant 1 : i32
    %25 = tpu.dynamic_rotate %4 by %c1_i32 dim 1 : vector<6x16x32xf32>, i32 -> vector<6x16x32xf32>
    %26 = vector.shape_cast %12 : vector<16x32xf32> to vector<1x16x32xf32>
    %27 = vector.broadcast %26 : vector<1x16x32xf32> to vector<6x16x32xf32>
    %28 = arith.mulf %25, %27 : vector<6x16x32xf32>
    %cst = arith.constant 2.000000e+00 : f32
    %29 = vector.broadcast %cst : f32 to vector<6x16x32xf32>
    %30 = arith.mulf %29, %4 : vector<6x16x32xf32>
    %31 = arith.addf %28, %30 : vector<6x16x32xf32>
    %c15_i32_7 = arith.constant 15 : i32
    %32 = tpu.dynamic_rotate %4 by %c15_i32_7 dim 1 : vector<6x16x32xf32>, i32 -> vector<6x16x32xf32>
    %33 = vector.shape_cast %16 : vector<16x32xf32> to vector<1x16x32xf32>
    %34 = vector.broadcast %33 : vector<1x16x32xf32> to vector<6x16x32xf32>
    %35 = arith.mulf %32, %34 : vector<6x16x32xf32>
    %36 = arith.addf %31, %35 : vector<6x16x32xf32>
    %c2_i32_8 = arith.constant 2 : i32
    %37 = tpu.dynamic_rotate %36 by %c2_i32_8 dim 2 : vector<6x16x32xf32>, i32 -> vector<6x16x32xf32>
    %38 = vector.shape_cast %20 : vector<16x32xf32> to vector<1x16x32xf32>
    %39 = vector.broadcast %38 : vector<1x16x32xf32> to vector<6x16x32xf32>
    %40 = arith.mulf %37, %39 : vector<6x16x32xf32>
    %c30_i32_9 = arith.constant 30 : i32
    %41 = tpu.dynamic_rotate %36 by %c30_i32_9 dim 2 : vector<6x16x32xf32>, i32 -> vector<6x16x32xf32>
    %42 = vector.shape_cast %24 : vector<16x32xf32> to vector<1x16x32xf32>
    %43 = vector.broadcast %42 : vector<1x16x32xf32> to vector<6x16x32xf32>
    %44 = arith.mulf %41, %43 : vector<6x16x32xf32>
    %45 = arith.subf %40, %44 : vector<6x16x32xf32>
    %c2_i32_10 = arith.constant 2 : i32
    %46 = tpu.dynamic_rotate %4 by %c2_i32_10 dim 2 : vector<6x16x32xf32>, i32 -> vector<6x16x32xf32>
    %47 = vector.shape_cast %20 : vector<16x32xf32> to vector<1x16x32xf32>
    %48 = vector.broadcast %47 : vector<1x16x32xf32> to vector<6x16x32xf32>
    %49 = arith.mulf %46, %48 : vector<6x16x32xf32>
    %cst_11 = arith.constant 2.000000e+00 : f32
    %50 = vector.broadcast %cst_11 : f32 to vector<6x16x32xf32>
    %51 = arith.mulf %50, %4 : vector<6x16x32xf32>
    %52 = arith.addf %49, %51 : vector<6x16x32xf32>
    %c30_i32_12 = arith.constant 30 : i32
    %53 = tpu.dynamic_rotate %4 by %c30_i32_12 dim 2 : vector<6x16x32xf32>, i32 -> vector<6x16x32xf32>
    %54 = vector.shape_cast %24 : vector<16x32xf32> to vector<1x16x32xf32>
    %55 = vector.broadcast %54 : vector<1x16x32xf32> to vector<6x16x32xf32>
    %56 = arith.mulf %53, %55 : vector<6x16x32xf32>
    %57 = arith.addf %52, %56 : vector<6x16x32xf32>
    %c1_i32_13 = arith.constant 1 : i32
    %58 = tpu.dynamic_rotate %57 by %c1_i32_13 dim 1 : vector<6x16x32xf32>, i32 -> vector<6x16x32xf32>
    %59 = vector.shape_cast %12 : vector<16x32xf32> to vector<1x16x32xf32>
    %60 = vector.broadcast %59 : vector<1x16x32xf32> to vector<6x16x32xf32>
    %61 = arith.mulf %58, %60 : vector<6x16x32xf32>
    %c15_i32_14 = arith.constant 15 : i32
    %62 = tpu.dynamic_rotate %57 by %c15_i32_14 dim 1 : vector<6x16x32xf32>, i32 -> vector<6x16x32xf32>
    %63 = vector.shape_cast %16 : vector<16x32xf32> to vector<1x16x32xf32>
    %64 = vector.broadcast %63 : vector<1x16x32xf32> to vector<6x16x32xf32>
    %65 = arith.mulf %62, %64 : vector<6x16x32xf32>
    %66 = arith.subf %61, %65 : vector<6x16x32xf32>
    %67 = arith.mulf %45, %45 : vector<6x16x32xf32>
    %68 = arith.mulf %66, %66 : vector<6x16x32xf32>
    %69 = arith.addf %67, %68 : vector<6x16x32xf32>
    %70 = math.sqrt %69 : vector<6x16x32xf32>
    %71 = arith.mulf %70, %6 : vector<6x16x32xf32>
    %c0_15 = arith.constant 0 : index
    %c0_16 = arith.constant 0 : index
    %72 = vector.load %arg4[%c0_15, %c0_16] : memref<16x32xf32, #tpu.memory_space<vmem>>, vector<16x32xf32>
    %cst_17 = arith.constant dense<0.000000e+00> : vector<16x32xf32>
    %73 = vector.multi_reduction <add>, %6, %cst_17 [0] : vector<6x16x32xf32> to vector<16x32xf32>
    %74 = arith.addf %72, %73 : vector<16x32xf32>
    %c0_18 = arith.constant 0 : index
    %c0_19 = arith.constant 0 : index
    %75 = vector.load %arg4[%c0_18, %c0_19] : memref<16x32xf32, #tpu.memory_space<vmem>>, vector<16x32xf32>
    tpu.vector_store %arg4[%c0_18, %c0_19], %74 {strides = array<i32>} : memref<16x32xf32, #tpu.memory_space<vmem>>, vector<16x32xf32>,
    %c0_20 = arith.constant 0 : index
    %c0_21 = arith.constant 0 : index
    %76 = vector.load %arg5[%c0_20, %c0_21] : memref<16x32xf32, #tpu.memory_space<vmem>>, vector<16x32xf32>
    %cst_22 = arith.constant dense<0.000000e+00> : vector<16x32xf32>
    %77 = vector.multi_reduction <add>, %71, %cst_22 [0] : vector<6x16x32xf32> to vector<16x32xf32>
    %78 = arith.addf %76, %77 : vector<16x32xf32>
    %c0_23 = arith.constant 0 : index
    %c0_24 = arith.constant 0 : index
    %79 = vector.load %arg5[%c0_23, %c0_24] : memref<16x32xf32, #tpu.memory_space<vmem>>, vector<16x32xf32>
    tpu.vector_store %arg5[%c0_23, %c0_24], %78 {strides = array<i32>} : memref<16x32xf32, #tpu.memory_space<vmem>>, vector<16x32xf32>,
    %c0_25 = arith.constant 0 : index
    %c0_26 = arith.constant 0 : index
    %80 = vector.load %arg6[%c0_25, %c0_26] : memref<16x32xf32, #tpu.memory_space<vmem>>, vector<16x32xf32>
    %cst_27 = arith.constant dense<0xFF800000> : vector<16x32xf32>
    %81 = vector.multi_reduction <maximumf>, %70, %cst_27 [0] : vector<6x16x32xf32> to vector<16x32xf32>
    %82 = arith.maximumf %80, %81 : vector<16x32xf32>
    %c0_28 = arith.constant 0 : index
    %c0_29 = arith.constant 0 : index
    %83 = vector.load %arg6[%c0_28, %c0_29] : memref<16x32xf32, #tpu.memory_space<vmem>>, vector<16x32xf32>
    tpu.vector_store %arg6[%c0_28, %c0_29], %82 {strides = array<i32>} : memref<16x32xf32, #tpu.memory_space<vmem>>, vector<16x32xf32>,
    %c0_i32_30 = arith.constant 0 : i32
    %84 = arith.cmpi eq, %arg0, %c0_i32_30 : i32
    %85 = arith.extui %84 : i1 to i32
    %c0_i32_31 = arith.constant 0 : i32
    %86 = arith.cmpi ne, %85, %c0_i32_31 : i32
    scf.if %86 {
      %c0_32 = arith.constant 0 : index
      %c0_33 = arith.constant 0 : index
      %87 = vector.load %arg4[%c0_32, %c0_33] : memref<16x32xf32, #tpu.memory_space<vmem>>, vector<16x32xf32>
      %88 = vector.shape_cast %87 : vector<16x32xf32> to vector<1x16x32xf32>
      %cst_34 = arith.constant dense<0.000000e+00> : vector<1xf32>
      %89 = vector.multi_reduction <add>, %88, %cst_34 [1, 2] : vector<1x16x32xf32> to vector<1xf32>
      %90 = vector.shape_cast %89 : vector<1xf32> to vector<1x1x1xf32>
      %91 = vector.extract %90[0, 0, 0] : f32 from vector<1x1x1xf32>
      %c0_35 = arith.constant 0 : index
      %92 = memref.load %arg3[%c0_35] : memref<3xf32, #tpu.memory_space<smem>>
      memref.store %91, %arg3[%c0_35] : memref<3xf32, #tpu.memory_space<smem>>
      %c0_36 = arith.constant 0 : index
      %c0_37 = arith.constant 0 : index
      %93 = vector.load %arg5[%c0_36, %c0_37] : memref<16x32xf32, #tpu.memory_space<vmem>>, vector<16x32xf32>
      %94 = vector.shape_cast %93 : vector<16x32xf32> to vector<1x16x32xf32>
      %cst_38 = arith.constant dense<0.000000e+00> : vector<1xf32>
      %95 = vector.multi_reduction <add>, %94, %cst_38 [1, 2] : vector<1x16x32xf32> to vector<1xf32>
      %96 = vector.shape_cast %95 : vector<1xf32> to vector<1x1x1xf32>
      %97 = vector.extract %96[0, 0, 0] : f32 from vector<1x1x1xf32>
      %c1 = arith.constant 1 : index
      %98 = memref.load %arg3[%c1] : memref<3xf32, #tpu.memory_space<smem>>
      memref.store %97, %arg3[%c1] : memref<3xf32, #tpu.memory_space<smem>>
      %c0_39 = arith.constant 0 : index
      %c0_40 = arith.constant 0 : index
      %99 = vector.load %arg6[%c0_39, %c0_40] : memref<16x32xf32, #tpu.memory_space<vmem>>, vector<16x32xf32>
      %100 = vector.shape_cast %99 : vector<16x32xf32> to vector<1x16x32xf32>
      %cst_41 = arith.constant dense<0xFF800000> : vector<1xf32>
      %101 = vector.multi_reduction <maximumf>, %100, %cst_41 [1, 2] : vector<1x16x32xf32> to vector<1xf32>
      %102 = vector.shape_cast %101 : vector<1xf32> to vector<1x1x1xf32>
      %103 = vector.extract %102[0, 0, 0] : f32 from vector<1x1x1xf32>
      %c2 = arith.constant 2 : index
      %104 = memref.load %arg3[%c2] : memref<3xf32, #tpu.memory_space<smem>>
      memref.store %103, %arg3[%c2] : memref<3xf32, #tpu.memory_space<smem>>
    } else {
    }
    return
  }
  func.func @transform_0(%arg0: i32) -> (i32, i32, i32) {
    %c0_i32 = arith.constant 0 : i32
    %c0_i32_0 = arith.constant 0 : i32
    %c0_i32_1 = arith.constant 0 : i32
    return %arg0, %c0_i32, %c0_i32_0 : i32, i32, i32
  }
  func.func @transform_1(%arg0: i32) -> (i32, i32, i32) {
    %c0_i32 = arith.constant 0 : i32
    %c0_i32_0 = arith.constant 0 : i32
    %c0_i32_1 = arith.constant 0 : i32
    return %arg0, %c0_i32, %c0_i32_0 : i32, i32, i32
  }
  func.func @transform_2(%arg0: i32) -> i32 {
    %c0_i32 = arith.constant 0 : i32
    %c0_i32_0 = arith.constant 0 : i32
    return %c0_i32 : i32
  }
}

</mosaic_0001>

<llo_original>
// kernel: l1_loss.1
$region0: #{l1_loss.1}
  #allocation0 [shape = 'u32[]', space=smem, size = 0x4, offset = 0x4, fixed_abs, tag = 'smem constant byte address 0x4 - core index']
  #allocation1 [shape = 'u32[144,128]{1,0:T(1,128)}', space=vmem, size = 0x12000, scoped, tag = 'internal scratch']
  #allocation2 [shape = 'f32[16,32]{1,0:T(8,128)}', space=vmem, size = 0x2000, scoped, tag = 'scratch operand']
  #allocation3 [shape = 'f32[16,32]{1,0:T(8,128)}', space=vmem, size = 0x2000, scoped, tag = 'scratch operand']
  #allocation4 [shape = 'f32[16,32]{1,0:T(8,128)}', space=vmem, size = 0x2000, scoped, tag = 'scratch operand']
  %s0 = inlined_call_operand.vmem [shape: f32[6,16,32], index: 0, kind: input, shape index: {}]
  %s1 = inlined_call_operand.vmem [shape: f32[6,16,32], index: 1, kind: input, shape index: {}]
  %s2 = inlined_call_operand.vmem [shape: f32[3], index: 2, kind: output, shape index: {}]
  %s3 = sld [smem:[#allocation0]]
  $region26: #{l1_loss.1} parent=0
    _
  %s5 = ssub.s32 1, %s3
  %s6 = scalar_select 0, %s5, %s3
  $region1: #{l1_loss.1} parent=0
    #allocation5 [shape = 'u8[512]{0}', space=smem, size = 0x200, scoped, tag = 'output window, operand 0, single buffered']
    #allocation6 [shape = 's32[1]{0}', space=sflag, size = 0x4, scoped, tag = 'scoped memory for l1_loss.1']
    %7 = vsyncpa [#allocation6], 0
    // Predicated region
    $region2: #{l1_loss.1} parent=1 // pred_check
      _
    $region3: #{l1_loss.1} parent=1 // pred_check_branch
      %9 = sbr.rel (0) target = $region5
    $region4: #{l1_loss.1} parent=1 // pred_region
      _
    $region5: #{l1_loss.1} parent=1 // pred_fallthru
      _
    // Predicated region
    $region6: #{l1_loss.1} parent=1 // pred_check
      _
    $region7: #{l1_loss.1} parent=1 // pred_check_branch
      %11 = sbr.rel (0) target = $region9
    $region8: #{l1_loss.1} parent=1 // pred_region
      _
    $region9: #{l1_loss.1} parent=1 // pred_fallthru
      _
    %p12 = scmp.eq.s32.totalorder 0, 0
    // Predicated region
    $region10: #{l1_loss.1} parent=1 // pred_check
      %p13 = pneg %p12
    $region11: #{l1_loss.1} parent=1 // pred_check_branch
      %15 = sbr.rel (%p13) target = $region13
    $region12: #{l1_loss.1} parent=1 // pred_region
      %vm16 = vcmask 261120
      %17 = vst.msk [vmem:[#allocation2] sm:$0xff] %vm16, 0.0
      %18 = vst.msk [vmem:[#allocation2 + $0x8] sm:$0xff] %vm16, 0.0
      %19 = vst.msk [vmem:[#allocation3] sm:$0xff] %vm16, 0.0
      %20 = vst.msk [vmem:[#allocation3 + $0x8] sm:$0xff] %vm16, 0.0
      %21 = vst.msk [vmem:[#allocation4] sm:$0xff] %vm16, 0.0
      %22 = vst.msk [vmem:[#allocation4 + $0x8] sm:$0xff] %vm16, 0.0
    $region13: #{l1_loss.1} parent=1 // pred_fallthru
      _
    %v23 = vld [vmem:[%s0] sm:$0xff]
    %v24 = vld [vmem:[%s0 + $0x8] sm:$0xff]
    %v25 = vld [vmem:[%s0 + $0x10] sm:$0xff]
    %v26 = vld [vmem:[%s0 + $0x18] sm:$0xff]
    %v27 = vld [vmem:[%s0 + $0x20] sm:$0xff]
    %v28 = vld [vmem:[%s0 + $0x28] sm:$0xff]
    %v29 = vld [vmem:[%s0 + $0x30] sm:$0xff]
    %v30 = vld [vmem:[%s0 + $0x38] sm:$0xff]
    %v31 = vld [vmem:[%s0 + $0x40] sm:$0xff]
    %v32 = vld [vmem:[%s0 + $0x48] sm:$0xff]
    %v33 = vld [vmem:[%s0 + $0x50] sm:$0xff]
    %v34 = vld [vmem:[%s0 + $0x58] sm:$0xff]
    %v35 = vld [vmem:[%s1] sm:$0xff]
    %v36 = vld [vmem:[%s1 + $0x8] sm:$0xff]
    %v37 = vld [vmem:[%s1 + $0x10] sm:$0xff]
    %v38 = vld [vmem:[%s1 + $0x18] sm:$0xff]
    %v39 = vld [vmem:[%s1 + $0x20] sm:$0xff]
    %v40 = vld [vmem:[%s1 + $0x28] sm:$0xff]
    %v41 = vld [vmem:[%s1 + $0x30] sm:$0xff]
    %v42 = vld [vmem:[%s1 + $0x38] sm:$0xff]
    %v43 = vld [vmem:[%s1 + $0x40] sm:$0xff]
    %v44 = vld [vmem:[%s1 + $0x48] sm:$0xff]
    %v45 = vld [vmem:[%s1 + $0x50] sm:$0xff]
    %v46 = vld [vmem:[%s1 + $0x58] sm:$0xff]
    %v47 = vsub.f32 %v23, %v35
    %v48 = vsub.f32 %v24, %v36
    %v49 = vsub.f32 %v25, %v37
    %v50 = vsub.f32 %v26, %v38
    %v51 = vsub.f32 %v27, %v39
    %v52 = vsub.f32 %v28, %v40
    %v53 = vsub.f32 %v29, %v41
    %v54 = vsub.f32 %v30, %v42
    %v55 = vsub.f32 %v31, %v43
    %v56 = vsub.f32 %v32, %v44
    %v57 = vsub.f32 %v33, %v45
    %v58 = vsub.f32 %v34, %v46
    %v59 = vand.u32 2147483647, %v47
    %v60 = vand.u32 2147483647, %v48
    %v61 = vand.u32 2147483647, %v49
    %v62 = vand.u32 2147483647, %v50
    %v63 = vand.u32 2147483647, %v51
    %v64 = vand.u32 2147483647, %v52
    %v65 = vand.u32 2147483647, %v53
    %v66 = vand.u32 2147483647, %v54
    %v67 = vand.u32 2147483647, %v55
    %v68 = vand.u32 2147483647, %v56
    %v69 = vand.u32 2147483647, %v57
    %v70 = vand.u32 2147483647, %v58
    %v71 = vlaneseq
    %v72 = vshrl.u32 %v71, 7
    %v73 = vadd.s32 %v72, 8
    %v74 = vlaneseq
    %v75 = vand.u32 %v74, 127
    %vm76 = vcmp.gt.s32.totalorder %v72, 0
    %vm77 = vcmp.gt.s32.totalorder %v73, 0
    %v78 = vsel %vm76, 1, 0
    %v79 = vsel %vm77, 1, 0
    %v80 = vcvt.s32.f32 %v78
    %v81 = vcvt.s32.f32 %v79
    %vm82 = vcmp.lt.s32.totalorder %v72, 15
    %vm83 = vcmp.lt.s32.totalorder %v73, 15
    %v84 = vsel %vm82, 1, 0
    %v85 = vsel %vm83, 1, 0
    %v86 = vcvt.s32.f32 %v84
    %v87 = vcvt.s32.f32 %v85
    %vm88 = vcmp.ge.s32.totalorder %v75, 2
    %v89 = vsel %vm88, 1, 0
    %v90 = vcvt.s32.f32 %v89
    %vm91 = vcmp.lt.s32.totalorder %v75, 30
    %v92 = vsel %vm91, 1, 0
    %v93 = vcvt.s32.f32 %v92
    %v94 = vrot.slane %v35, 7
    %v95 = vrot.slane %v37, 7
    %v96 = vrot.slane %v39, 7
    %v97 = vrot.slane %v41, 7
    %v98 = vrot.slane %v43, 7
    %v99 = vrot.slane %v45, 7
    %v100 = vrot.slane %v36, 7
    %v101 = vrot.slane %v38, 7
    %v102 = vrot.slane %v40, 7
    %v103 = vrot.slane %v42, 7
    %v104 = vrot.slane %v44, 7
    %v105 = vrot.slane %v46, 7
    %vm106 = vcmp.lt.s32.totalorder %v72, 1
    %v107 = vsel %vm106, %v94, %v100
    %v108 = vsel %vm106, %v95, %v101
    %v109 = vsel %vm106, %v96, %v102
    %v110 = vsel %vm106, %v97, %v103
    %v111 = vsel %vm106, %v98, %v104
    %v112 = vsel %vm106, %v99, %v105
    %v113 = vsel %vm106, %v100, %v94
    %v114 = vsel %vm106, %v101, %v95
    %v115 = vsel %vm106, %v102, %v96
    %v116 = vsel %vm106, %v103, %v97
    %v117 = vsel %vm106, %v104, %v98
    %v118 = vsel %vm106, %v105, %v99
    %v119 = vmul.f32 %v113, %v80
    %v120 = vmul.f32 %v107, %v81
    %v121 = vmul.f32 %v114, %v80
    %v122 = vmul.f32 %v108, %v81
    %v123 = vmul.f32 %v115, %v80
    %v124 = vmul.f32 %v109, %v81
    %v125 = vmul.f32 %v116, %v80
    %v126 = vmul.f32 %v110, %v81
    %v127 = vmul.f32 %v117, %v80
    %v128 = vmul.f32 %v111, %v81
    %v129 = vmul.f32 %v118, %v80
    %v130 = vmul.f32 %v112, %v81
    %v131 = vmul.f32 %v35, 2.0
    %v132 = vmul.f32 %v36, 2.0
    %v133 = vmul.f32 %v37, 2.0
    %v134 = vmul.f32 %v38, 2.0
    %v135 = vmul.f32 %v39, 2.0
    %v136 = vmul.f32 %v40, 2.0
    %v137 = vmul.f32 %v41, 2.0
    %v138 = vmul.f32 %v42, 2.0
    %v139 = vmul.f32 %v43, 2.0
    %v140 = vmul.f32 %v44, 2.0
    %v141 = vmul.f32 %v45, 2.0
    %v142 = vmul.f32 %v46, 2.0
    %v143 = vadd.f32 %v119, %v131
    %v144 = vadd.f32 %v120, %v132
    %v145 = vadd.f32 %v121, %v133
    %v146 = vadd.f32 %v122, %v134
    %v147 = vadd.f32 %v123, %v135
    %v148 = vadd.f32 %v124, %v136
    %v149 = vadd.f32 %v125, %v137
    %v150 = vadd.f32 %v126, %v138
    %v151 = vadd.f32 %v127, %v139
    %v152 = vadd.f32 %v128, %v140
    %v153 = vadd.f32 %v129, %v141
    %v154 = vadd.f32 %v130, %v142
    %v155 = vrot.slane %v35, 1
    %v156 = vrot.slane %v37, 1
    %v157 = vrot.slane %v39, 1
    %v158 = vrot.slane %v41, 1
    %v159 = vrot.slane %v43, 1
    %v160 = vrot.slane %v45, 1
    %v161 = vrot.slane %v36, 1
    %v162 = vrot.slane %v38, 1
    %v163 = vrot.slane %v40, 1
    %v164 = vrot.slane %v42, 1
    %v165 = vrot.slane %v44, 1
    %v166 = vrot.slane %v46, 1
    %vm167 = vcmp.lt.s32.totalorder %v72, 7
    %v168 = vsel %vm167, %v155, %v161
    %v169 = vsel %vm167, %v156, %v162
    %v170 = vsel %vm167, %v157, %v163
    %v171 = vsel %vm167, %v158, %v164
    %v172 = vsel %vm167, %v159, %v165
    %v173 = vsel %vm167, %v160, %v166
    %v174 = vsel %vm167, %v161, %v155
    %v175 = vsel %vm167, %v162, %v156
    %v176 = vsel %vm167, %v163, %v157
    %v177 = vsel %vm167, %v164, %v158
    %v178 = vsel %vm167, %v165, %v159
    %v179 = vsel %vm167, %v166, %v160
    %v180 = vmul.f32 %v168, %v86
    %v181 = vmul.f32 %v174, %v87
    %v182 = vmul.f32 %v169, %v86
    %v183 = vmul.f32 %v175, %v87
    %v184 = vmul.f32 %v170, %v86
    %v185 = vmul.f32 %v176, %v87
    %v186 = vmul.f32 %v171, %v86
    %v187 = vmul.f32 %v177, %v87
    %v188 = vmul.f32 %v172, %v86
    %v189 = vmul.f32 %v178, %v87
    %v190 = vmul.f32 %v173, %v86
    %v191 = vmul.f32 %v179, %v87
    %v192 = vadd.f32 %v143, %v180
    %v193 = vadd.f32 %v144, %v181
    %v194 = vadd.f32 %v145, %v182
    %v195 = vadd.f32 %v146, %v183
    %v196 = vadd.f32 %v147, %v184
    %v197 = vadd.f32 %v148, %v185
    %v198 = vadd.f32 %v149, %v186
    %v199 = vadd.f32 %v150, %v187
    %v200 = vadd.f32 %v151, %v188
    %v201 = vadd.f32 %v152, %v189
    %v202 = vadd.f32 %v153, %v190
    %v203 = vadd.f32 %v154, %v191
    %vm204 = vcmask 1047808
    %205 = vrot.lane.b32.xlu0 %v192, 32
    %v206 = vpop.permute.xlu0 %205
    %v207 = vsel %vm204, %v206, %v192
    %208 = vrot.lane.b32.xlu0 %v193, 32
    %v209 = vpop.permute.xlu0 %208
    %v210 = vsel %vm204, %v209, %v193
    %211 = vrot.lane.b32.xlu0 %v194, 32
    %v212 = vpop.permute.xlu0 %211
    %v213 = vsel %vm204, %v212, %v194
    %214 = vrot.lane.b32.xlu0 %v195, 32
    %v215 = vpop.permute.xlu0 %214
    %v216 = vsel %vm204, %v215, %v195
    %217 = vrot.lane.b32.xlu0 %v196, 32
    %v218 = vpop.permute.xlu0 %217
    %v219 = vsel %vm204, %v218, %v196
    %220 = vrot.lane.b32.xlu0 %v197, 32
    %v221 = vpop.permute.xlu0 %220
    %v222 = vsel %vm204, %v221, %v197
    %223 = vrot.lane.b32.xlu0 %v198, 32
    %v224 = vpop.permute.xlu0 %223
    %v225 = vsel %vm204, %v224, %v198
    %226 = vrot.lane.b32.xlu0 %v199, 32
    %v227 = vpop.permute.xlu0 %226
    %v228 = vsel %vm204, %v227, %v199
    %229 = vrot.lane.b32.xlu0 %v200, 32
    %v230 = vpop.permute.xlu0 %229
    %v231 = vsel %vm204, %v230, %v200
    %232 = vrot.lane.b32.xlu0 %v201, 32
    %v233 = vpop.permute.xlu0 %232
    %v234 = vsel %vm204, %v233, %v201
    %235 = vrot.lane.b32.xlu0 %v202, 32
    %v236 = vpop.permute.xlu0 %235
    %v237 = vsel %vm204, %v236, %v202
    %238 = vrot.lane.b32.xlu0 %v203, 32
    %v239 = vpop.permute.xlu0 %238
    %v240 = vsel %vm204, %v239, %v203
    %241 = vrot.lane.b32.xlu0 %v207, 32
    %v242 = vpop.permute.xlu0 %241
    %243 = vrot.lane.b32.xlu0 %v210, 32
    %v244 = vpop.permute.xlu0 %243
    %245 = vrot.lane.b32.xlu0 %v213, 32
    %v246 = vpop.permute.xlu0 %245
    %247 = vrot.lane.b32.xlu0 %v216, 32
    %v248 = vpop.permute.xlu0 %247
    %249 = vrot.lane.b32.xlu0 %v219, 32
    %v250 = vpop.permute.xlu0 %249
    %251 = vrot.lane.b32.xlu0 %v222, 32
    %v252 = vpop.permute.xlu0 %251
    %253 = vrot.lane.b32.xlu0 %v225, 32
    %v254 = vpop.permute.xlu0 %253
    %255 = vrot.lane.b32.xlu0 %v228, 32
    %v256 = vpop.permute.xlu0 %255
    %257 = vrot.lane.b32.xlu0 %v231, 32
    %v258 = vpop.permute.xlu0 %257
    %259 = vrot.lane.b32.xlu0 %v234, 32
    %v260 = vpop.permute.xlu0 %259
    %261 = vrot.lane.b32.xlu0 %v237, 32
    %v262 = vpop.permute.xlu0 %261
    %263 = vrot.lane.b32.xlu0 %v240, 32
    %v264 = vpop.permute.xlu0 %263
    %v265 = vsel %vm204, %v242, %v192
    %v266 = vsel %vm204, %v244, %v193
    %v267 = vsel %vm204, %v246, %v194
    %v268 = vsel %vm204, %v248, %v195
    %v269 = vsel %vm204, %v250, %v196
    %v270 = vsel %vm204, %v252, %v197
    %v271 = vsel %vm204, %v254, %v198
    %v272 = vsel %vm204, %v256, %v199
    %v273 = vsel %vm204, %v258, %v200
    %v274 = vsel %vm204, %v260, %v201
    %v275 = vsel %vm204, %v262, %v202
    %v276 = vsel %vm204, %v264, %v203
    %278 = vrot.lane.b32.xlu0 %v90, 30
    %v279 = vpop.permute.xlu0 %278
    %v281 = vmul.f32 %v265, %v279
    %v282 = vmul.f32 %v266, %v279
    %v283 = vmul.f32 %v267, %v279
    %v284 = vmul.f32 %v268, %v279
    %v285 = vmul.f32 %v269, %v279
    %v286 = vmul.f32 %v270, %v279
    %v287 = vmul.f32 %v271, %v279
    %v288 = vmul.f32 %v272, %v279
    %v289 = vmul.f32 %v273, %v279
    %v290 = vmul.f32 %v274, %v279
    %v291 = vmul.f32 %v275, %v279
    %v292 = vmul.f32 %v276, %v279
    %294 = vrot.lane.b32.xlu0 %v93, 2
    %v295 = vpop.permute.xlu0 %294
    %v297 = vmul.f32 %v265, %v295
    %v298 = vmul.f32 %v266, %v295
    %v299 = vmul.f32 %v267, %v295
    %v300 = vmul.f32 %v268, %v295
    %v301 = vmul.f32 %v269, %v295
    %v302 = vmul.f32 %v270, %v295
    %v303 = vmul.f32 %v271, %v295
    %v304 = vmul.f32 %v272, %v295
    %v305 = vmul.f32 %v273, %v295
    %v306 = vmul.f32 %v274, %v295
    %v307 = vmul.f32 %v275, %v295
    %v308 = vmul.f32 %v276, %v295
    %321 = vrot.lane.b32.xlu0 %v297, 28
    %v322 = vpop.permute.xlu0 %321
    %323 = vrot.lane.b32.xlu0 %v298, 28
    %v324 = vpop.permute.xlu0 %323
    %325 = vrot.lane.b32.xlu0 %v299, 28
    %v326 = vpop.permute.xlu0 %325
    %327 = vrot.lane.b32.xlu0 %v300, 28
    %v328 = vpop.permute.xlu0 %327
    %329 = vrot.lane.b32.xlu0 %v301, 28
    %v330 = vpop.permute.xlu0 %329
    %331 = vrot.lane.b32.xlu0 %v302, 28
    %v332 = vpop.permute.xlu0 %331
    %333 = vrot.lane.b32.xlu0 %v303, 28
    %v334 = vpop.permute.xlu0 %333
    %335 = vrot.lane.b32.xlu0 %v304, 28
    %v336 = vpop.permute.xlu0 %335
    %337 = vrot.lane.b32.xlu0 %v305, 28
    %v338 = vpop.permute.xlu0 %337
    %339 = vrot.lane.b32.xlu0 %v306, 28
    %v340 = vpop.permute.xlu0 %339
    %341 = vrot.lane.b32.xlu0 %v307, 28
    %v342 = vpop.permute.xlu0 %341
    %343 = vrot.lane.b32.xlu0 %v308, 28
    %v344 = vpop.permute.xlu0 %343
    %v357 = vsub.f32 %v281, %v322
    %v358 = vsub.f32 %v282, %v324
    %v359 = vsub.f32 %v283, %v326
    %v360 = vsub.f32 %v284, %v328
    %v361 = vsub.f32 %v285, %v330
    %v362 = vsub.f32 %v286, %v332
    %v363 = vsub.f32 %v287, %v334
    %v364 = vsub.f32 %v288, %v336
    %v365 = vsub.f32 %v289, %v338
    %v366 = vsub.f32 %v290, %v340
    %v367 = vsub.f32 %v291, %v342
    %v368 = vsub.f32 %v292, %v344
    %369 = vrot.lane.b32.xlu0 %v35, 32
    %v370 = vpop.permute.xlu0 %369
    %v371 = vsel %vm204, %v370, %v35
    %372 = vrot.lane.b32.xlu0 %v36, 32
    %v373 = vpop.permute.xlu0 %372
    %v374 = vsel %vm204, %v373, %v36
    %375 = vrot.lane.b32.xlu0 %v37, 32
    %v376 = vpop.permute.xlu0 %375
    %v377 = vsel %vm204, %v376, %v37
    %378 = vrot.lane.b32.xlu0 %v38, 32
    %v379 = vpop.permute.xlu0 %378
    %v380 = vsel %vm204, %v379, %v38
    %381 = vrot.lane.b32.xlu0 %v39, 32
    %v382 = vpop.permute.xlu0 %381
    %v383 = vsel %vm204, %v382, %v39
    %384 = vrot.lane.b32.xlu0 %v40, 32
    %v385 = vpop.permute.xlu0 %384
    %v386 = vsel %vm204, %v385, %v40
    %387 = vrot.lane.b32.xlu0 %v41, 32
    %v388 = vpop.permute.xlu0 %387
    %v389 = vsel %vm204, %v388, %v41
    %390 = vrot.lane.b32.xlu0 %v42, 32
    %v391 = vpop.permute.xlu0 %390
    %v392 = vsel %vm204, %v391, %v42
    %393 = vrot.lane.b32.xlu0 %v43, 32
    %v394 = vpop.permute.xlu0 %393
    %v395 = vsel %vm204, %v394, %v43
    %396 = vrot.lane.b32.xlu0 %v44, 32
    %v397 = vpop.permute.xlu0 %396
    %v398 = vsel %vm204, %v397, %v44
    %399 = vrot.lane.b32.xlu0 %v45, 32
    %v400 = vpop.permute.xlu0 %399
    %v401 = vsel %vm204, %v400, %v45
    %402 = vrot.lane.b32.xlu0 %v46, 32
    %v403 = vpop.permute.xlu0 %402
    %v404 = vsel %vm204, %v403, %v46
    %405 = vrot.lane.b32.xlu0 %v371, 32
    %v406 = vpop.permute.xlu0 %405
    %407 = vrot.lane.b32.xlu0 %v374, 32
    %v408 = vpop.permute.xlu0 %407
    %409 = vrot.lane.b32.xlu0 %v377, 32
    %v410 = vpop.permute.xlu0 %409
    %411 = vrot.lane.b32.xlu0 %v380, 32
    %v412 = vpop.permute.xlu0 %411
    %413 = vrot.lane.b32.xlu0 %v383, 32
    %v414 = vpop.permute.xlu0 %413
    %415 = vrot.lane.b32.xlu0 %v386, 32
    %v416 = vpop.permute.xlu0 %415
    %417 = vrot.lane.b32.xlu0 %v389, 32
    %v418 = vpop.permute.xlu0 %417
    %419 = vrot.lane.b32.xlu0 %v392, 32
    %v420 = vpop.permute.xlu0 %419
    %421 = vrot.lane.b32.xlu0 %v395, 32
    %v422 = vpop.permute.xlu0 %421
    %423 = vrot.lane.b32.xlu0 %v398, 32
    %v424 = vpop.permute.xlu0 %423
    %425 = vrot.lane.b32.xlu0 %v401, 32
    %v426 = vpop.permute.xlu0 %425
    %427 = vrot.lane.b32.xlu0 %v404, 32
    %v428 = vpop.permute.xlu0 %427
    %v429 = vsel %vm204, %v406, %v35
    %v430 = vsel %vm204, %v408, %v36
    %v431 = vsel %vm204, %v410, %v37
    %v432 = vsel %vm204, %v412, %v38
    %v433 = vsel %vm204, %v414, %v39
    %v434 = vsel %vm204, %v416, %v40
    %v435 = vsel %vm204, %v418, %v41
    %v436 = vsel %vm204, %v420, %v42
    %v437 = vsel %vm204, %v422, %v43
    %v438 = vsel %vm204, %v424, %v44
    %v439 = vsel %vm204, %v426, %v45
    %v440 = vsel %vm204, %v428, %v46
    %v441 = vmul.f32 %v429, %v279
    %v442 = vmul.f32 %v430, %v279
    %v443 = vmul.f32 %v431, %v279
    %v444 = vmul.f32 %v432, %v279
    %v445 = vmul.f32 %v433, %v279
    %v446 = vmul.f32 %v434, %v279
    %v447 = vmul.f32 %v435, %v279
    %v448 = vmul.f32 %v436, %v279
    %v449 = vmul.f32 %v437, %v279
    %v450 = vmul.f32 %v438, %v279
    %v451 = vmul.f32 %v439, %v279
    %v452 = vmul.f32 %v440, %v279
    %465 = vrot.lane.b32.xlu0 %v131, 30
    %v466 = vpop.permute.xlu0 %465
    %467 = vrot.lane.b32.xlu0 %v132, 30
    %v468 = vpop.permute.xlu0 %467
    %469 = vrot.lane.b32.xlu0 %v133, 30
    %v470 = vpop.permute.xlu0 %469
    %471 = vrot.lane.b32.xlu0 %v134, 30
    %v472 = vpop.permute.xlu0 %471
    %473 = vrot.lane.b32.xlu0 %v135, 30
    %v474 = vpop.permute.xlu0 %473
    %475 = vrot.lane.b32.xlu0 %v136, 30
    %v476 = vpop.permute.xlu0 %475
    %477 = vrot.lane.b32.xlu0 %v137, 30
    %v478 = vpop.permute.xlu0 %477
    %479 = vrot.lane.b32.xlu0 %v138, 30
    %v480 = vpop.permute.xlu0 %479
    %481 = vrot.lane.b32.xlu0 %v139, 30
    %v482 = vpop.permute.xlu0 %481
    %483 = vrot.lane.b32.xlu0 %v140, 30
    %v484 = vpop.permute.xlu0 %483
    %485 = vrot.lane.b32.xlu0 %v141, 30
    %v486 = vpop.permute.xlu0 %485
    %487 = vrot.lane.b32.xlu0 %v142, 30
    %v488 = vpop.permute.xlu0 %487
    %v501 = vadd.f32 %v441, %v466
    %v502 = vadd.f32 %v442, %v468
    %v503 = vadd.f32 %v443, %v470
    %v504 = vadd.f32 %v444, %v472
    %v505 = vadd.f32 %v445, %v474
    %v506 = vadd.f32 %v446, %v476
    %v507 = vadd.f32 %v447, %v478
    %v508 = vadd.f32 %v448, %v480
    %v509 = vadd.f32 %v449, %v482
    %v510 = vadd.f32 %v450, %v484
    %v511 = vadd.f32 %v451, %v486
    %v512 = vadd.f32 %v452, %v488
    %v513 = vmul.f32 %v429, %v295
    %v514 = vmul.f32 %v430, %v295
    %v515 = vmul.f32 %v431, %v295
    %v516 = vmul.f32 %v432, %v295
    %v517 = vmul.f32 %v433, %v295
    %v518 = vmul.f32 %v434, %v295
    %v519 = vmul.f32 %v435, %v295
    %v520 = vmul.f32 %v436, %v295
    %v521 = vmul.f32 %v437, %v295
    %v522 = vmul.f32 %v438, %v295
    %v523 = vmul.f32 %v439, %v295
    %v524 = vmul.f32 %v440, %v295
    %537 = vrot.lane.b32.xlu0 %v513, 28
    %v538 = vpop.permute.xlu0 %537
    %539 = vrot.lane.b32.xlu0 %v514, 28
    %v540 = vpop.permute.xlu0 %539
    %541 = vrot.lane.b32.xlu0 %v515, 28
    %v542 = vpop.permute.xlu0 %541
    %543 = vrot.lane.b32.xlu0 %v516, 28
    %v544 = vpop.permute.xlu0 %543
    %545 = vrot.lane.b32.xlu0 %v517, 28
    %v546 = vpop.permute.xlu0 %545
    %547 = vrot.lane.b32.xlu0 %v518, 28
    %v548 = vpop.permute.xlu0 %547
    %549 = vrot.lane.b32.xlu0 %v519, 28
    %v550 = vpop.permute.xlu0 %549
    %551 = vrot.lane.b32.xlu0 %v520, 28
    %v552 = vpop.permute.xlu0 %551
    %553 = vrot.lane.b32.xlu0 %v521, 28
    %v554 = vpop.permute.xlu0 %553
    %555 = vrot.lane.b32.xlu0 %v522, 28
    %v556 = vpop.permute.xlu0 %555
    %557 = vrot.lane.b32.xlu0 %v523, 28
    %v558 = vpop.permute.xlu0 %557
    %559 = vrot.lane.b32.xlu0 %v524, 28
    %v560 = vpop.permute.xlu0 %559
    %v573 = vadd.f32 %v501, %v538
    %v574 = vadd.f32 %v502, %v540
    %v575 = vadd.f32 %v503, %v542
    %v576 = vadd.f32 %v504, %v544
    %v577 = vadd.f32 %v505, %v546
    %v578 = vadd.f32 %v506, %v548
    %v579 = vadd.f32 %v507, %v550
    %v580 = vadd.f32 %v508, %v552
    %v581 = vadd.f32 %v509, %v554
    %v582 = vadd.f32 %v510, %v556
    %v583 = vadd.f32 %v511, %v558
    %v584 = vadd.f32 %v512, %v560
    %597 = vrot.lane.b32.xlu0 %v573, 98
    %v598 = vpop.permute.xlu0 %597
    %599 = vrot.lane.b32.xlu0 %v574, 98
    %v600 = vpop.permute.xlu0 %599
    %601 = vrot.lane.b32.xlu0 %v575, 98
    %v602 = vpop.permute.xlu0 %601
    %603 = vrot.lane.b32.xlu0 %v576, 98
    %v604 = vpop.permute.xlu0 %603
    %605 = vrot.lane.b32.xlu0 %v577, 98
    %v606 = vpop.permute.xlu0 %605
    %607 = vrot.lane.b32.xlu0 %v578, 98
    %v608 = vpop.permute.xlu0 %607
    %609 = vrot.lane.b32.xlu0 %v579, 98
    %v610 = vpop.permute.xlu0 %609
    %611 = vrot.lane.b32.xlu0 %v580, 98
    %v612 = vpop.permute.xlu0 %611
    %613 = vrot.lane.b32.xlu0 %v581, 98
    %v614 = vpop.permute.xlu0 %613
    %615 = vrot.lane.b32.xlu0 %v582, 98
    %v616 = vpop.permute.xlu0 %615
    %617 = vrot.lane.b32.xlu0 %v583, 98
    %v618 = vpop.permute.xlu0 %617
    %619 = vrot.lane.b32.xlu0 %v584, 98
    %v620 = vpop.permute.xlu0 %619
    %v633 = vrot.slane %v598, 7
    %v634 = vrot.slane %v602, 7
    %v635 = vrot.slane %v606, 7
    %v636 = vrot.slane %v610, 7
    %v637 = vrot.slane %v614, 7
    %v638 = vrot.slane %v618, 7
    %v639 = vrot.slane %v600, 7
    %v640 = vrot.slane %v604, 7
    %v641 = vrot.slane %v608, 7
    %v642 = vrot.slane %v612, 7
    %v643 = vrot.slane %v616, 7
    %v644 = vrot.slane %v620, 7
    %v645 = vsel %vm106, %v633, %v639
    %v646 = vsel %vm106, %v634, %v640
    %v647 = vsel %vm106, %v635, %v641
    %v648 = vsel %vm106, %v636, %v642
    %v649 = vsel %vm106, %v637, %v643
    %v650 = vsel %vm106, %v638, %v644
    %v651 = vsel %vm106, %v639, %v633
    %v652 = vsel %vm106, %v640, %v634
    %v653 = vsel %vm106, %v641, %v635
    %v654 = vsel %vm106, %v642, %v636
    %v655 = vsel %vm106, %v643, %v637
    %v656 = vsel %vm106, %v644, %v638
    %v657 = vmul.f32 %v651, %v80
    %v658 = vmul.f32 %v645, %v81
    %v659 = vmul.f32 %v652, %v80
    %v660 = vmul.f32 %v646, %v81
    %v661 = vmul.f32 %v653, %v80
    %v662 = vmul.f32 %v647, %v81
    %v663 = vmul.f32 %v654, %v80
    %v664 = vmul.f32 %v648, %v81
    %v665 = vmul.f32 %v655, %v80
    %v666 = vmul.f32 %v649, %v81
    %v667 = vmul.f32 %v656, %v80
    %v668 = vmul.f32 %v650, %v81
    %v669 = vrot.slane %v598, 1
    %v670 = vrot.slane %v602, 1
    %v671 = vrot.slane %v606, 1
    %v672 = vrot.slane %v610, 1
    %v673 = vrot.slane %v614, 1
    %v674 = vrot.slane %v618, 1
    %v675 = vrot.slane %v600, 1
    %v676 = vrot.slane %v604, 1
    %v677 = vrot.slane %v608, 1
    %v678 = vrot.slane %v612, 1
    %v679 = vrot.slane %v616, 1
    %v680 = vrot.slane %v620, 1
    %v681 = vsel %vm167, %v669, %v675
    %v682 = vsel %vm167, %v670, %v676
    %v683 = vsel %vm167, %v671, %v677
    %v684 = vsel %vm167, %v672, %v678
    %v685 = vsel %vm167, %v673, %v679
    %v686 = vsel %vm167, %v674, %v680
    %v687 = vsel %vm167, %v675, %v669
    %v688 = vsel %vm167, %v676, %v670
    %v689 = vsel %vm167, %v677, %v671
    %v690 = vsel %vm167, %v678, %v672
    %v691 = vsel %vm167, %v679, %v673
    %v692 = vsel %vm167, %v680, %v674
    %v693 = vmul.f32 %v681, %v86
    %v694 = vmul.f32 %v687, %v87
    %v695 = vmul.f32 %v682, %v86
    %v696 = vmul.f32 %v688, %v87
    %v697 = vmul.f32 %v683, %v86
    %v698 = vmul.f32 %v689, %v87
    %v699 = vmul.f32 %v684, %v86
    %v700 = vmul.f32 %v690, %v87
    %v701 = vmul.f32 %v685, %v86
    %v702 = vmul.f32 %v691, %v87
    %v703 = vmul.f32 %v686, %v86
    %v704 = vmul.f32 %v692, %v87
    %v705 = vsub.f32 %v657, %v693
    %v706 = vsub.f32 %v658, %v694
    %v707 = vsub.f32 %v659, %v695
    %v708 = vsub.f32 %v660, %v696
    %v709 = vsub.f32 %v661, %v697
    %v710 = vsub.f32 %v662, %v698
    %v711 = vsub.f32 %v663, %v699
    %v712 = vsub.f32 %v664, %v700
    %v713 = vsub.f32 %v665, %v701
    %v714 = vsub.f32 %v666, %v702
    %v715 = vsub.f32 %v667, %v703
    %v716 = vsub.f32 %v668, %v704
    %v717 = vmul.f32 %v357, %v357
    %v718 = vmul.f32 %v358, %v358
    %v719 = vmul.f32 %v359, %v359
    %v720 = vmul.f32 %v360, %v360
    %v721 = vmul.f32 %v361, %v361
    %v722 = vmul.f32 %v362, %v362
    %v723 = vmul.f32 %v363, %v363
    %v724 = vmul.f32 %v364, %v364
    %v725 = vmul.f32 %v365, %v365
    %v726 = vmul.f32 %v366, %v366
    %v727 = vmul.f32 %v367, %v367
    %v728 = vmul.f32 %v368, %v368
    %v729 = vmul.f32 %v705, %v705
    %v730 = vmul.f32 %v706, %v706
    %v731 = vmul.f32 %v707, %v707
    %v732 = vmul.f32 %v708, %v708
    %v733 = vmul.f32 %v709, %v709
    %v734 = vmul.f32 %v710, %v710
    %v735 = vmul.f32 %v711, %v711
    %v736 = vmul.f32 %v712, %v712
    %v737 = vmul.f32 %v713, %v713
    %v738 = vmul.f32 %v714, %v714
    %v739 = vmul.f32 %v715, %v715
    %v740 = vmul.f32 %v716, %v716
    %753 = vrot.lane.b32.xlu0 %v729, 30
    %v754 = vpop.permute.xlu0 %753
    %755 = vrot.lane.b32.xlu0 %v730, 30
    %v756 = vpop.permute.xlu0 %755
    %757 = vrot.lane.b32.xlu0 %v731, 30
    %v758 = vpop.permute.xlu0 %757
    %759 = vrot.lane.b32.xlu0 %v732, 30
    %v760 = vpop.permute.xlu0 %759
    %761 = vrot.lane.b32.xlu0 %v733, 30
    %v762 = vpop.permute.xlu0 %761
    %763 = vrot.lane.b32.xlu0 %v734, 30
    %v764 = vpop.permute.xlu0 %763
    %765 = vrot.lane.b32.xlu0 %v735, 30
    %v766 = vpop.permute.xlu0 %765
    %767 = vrot.lane.b32.xlu0 %v736, 30
    %v768 = vpop.permute.xlu0 %767
    %769 = vrot.lane.b32.xlu0 %v737, 30
    %v770 = vpop.permute.xlu0 %769
    %771 = vrot.lane.b32.xlu0 %v738, 30
    %v772 = vpop.permute.xlu0 %771
    %773 = vrot.lane.b32.xlu0 %v739, 30
    %v774 = vpop.permute.xlu0 %773
    %775 = vrot.lane.b32.xlu0 %v740, 30
    %v776 = vpop.permute.xlu0 %775
    %v789 = vadd.f32 %v717, %v754
    %v790 = vadd.f32 %v718, %v756
    %v791 = vadd.f32 %v719, %v758
    %v792 = vadd.f32 %v720, %v760
    %v793 = vadd.f32 %v721, %v762
    %v794 = vadd.f32 %v722, %v764
    %v795 = vadd.f32 %v723, %v766
    %v796 = vadd.f32 %v724, %v768
    %v797 = vadd.f32 %v725, %v770
    %v798 = vadd.f32 %v726, %v772
    %v799 = vadd.f32 %v727, %v774
    %v800 = vadd.f32 %v728, %v776
    %v801 = vrsqrt.pop %v789
    %v802 = vmul.f32 %v789, %v801
    %vm803 = vcmp.eq.f32.partialorder %v789, inf
    %v804 = vsel %vm803, %v789, %v802
    %vm805 = vcmp.eq.f32.partialorder %v789, 0.0
    %v806 = vand.u32 %v789, 2147483648
    %v807 = vsel %vm805, %v806, %v804
    %v808 = vrsqrt.pop %v790
    %v809 = vmul.f32 %v790, %v808
    %vm810 = vcmp.eq.f32.partialorder %v790, inf
    %v811 = vsel %vm810, %v790, %v809
    %vm812 = vcmp.eq.f32.partialorder %v790, 0.0
    %v813 = vand.u32 %v790, 2147483648
    %v814 = vsel %vm812, %v813, %v811
    %v815 = vrsqrt.pop %v791
    %v816 = vmul.f32 %v791, %v815
    %vm817 = vcmp.eq.f32.partialorder %v791, inf
    %v818 = vsel %vm817, %v791, %v816
    %vm819 = vcmp.eq.f32.partialorder %v791, 0.0
    %v820 = vand.u32 %v791, 2147483648
    %v821 = vsel %vm819, %v820, %v818
    %v822 = vrsqrt.pop %v792
    %v823 = vmul.f32 %v792, %v822
    %vm824 = vcmp.eq.f32.partialorder %v792, inf
    %v825 = vsel %vm824, %v792, %v823
    %vm826 = vcmp.eq.f32.partialorder %v792, 0.0
    %v827 = vand.u32 %v792, 2147483648
    %v828 = vsel %vm826, %v827, %v825
    %v829 = vrsqrt.pop %v793
    %v830 = vmul.f32 %v793, %v829
    %vm831 = vcmp.eq.f32.partialorder %v793, inf
    %v832 = vsel %vm831, %v793, %v830
    %vm833 = vcmp.eq.f32.partialorder %v793, 0.0
    %v834 = vand.u32 %v793, 2147483648
    %v835 = vsel %vm833, %v834, %v832
    %v836 = vrsqrt.pop %v794
    %v837 = vmul.f32 %v794, %v836
    %vm838 = vcmp.eq.f32.partialorder %v794, inf
    %v839 = vsel %vm838, %v794, %v837
    %vm840 = vcmp.eq.f32.partialorder %v794, 0.0
    %v841 = vand.u32 %v794, 2147483648
    %v842 = vsel %vm840, %v841, %v839
    %v843 = vrsqrt.pop %v795
    %v844 = vmul.f32 %v795, %v843
    %vm845 = vcmp.eq.f32.partialorder %v795, inf
    %v846 = vsel %vm845, %v795, %v844
    %vm847 = vcmp.eq.f32.partialorder %v795, 0.0
    %v848 = vand.u32 %v795, 2147483648
    %v849 = vsel %vm847, %v848, %v846
    %v850 = vrsqrt.pop %v796
    %v851 = vmul.f32 %v796, %v850
    %vm852 = vcmp.eq.f32.partialorder %v796, inf
    %v853 = vsel %vm852, %v796, %v851
    %vm854 = vcmp.eq.f32.partialorder %v796, 0.0
    %v855 = vand.u32 %v796, 2147483648
    %v856 = vsel %vm854, %v855, %v853
    %v857 = vrsqrt.pop %v797
    %v858 = vmul.f32 %v797, %v857
    %vm859 = vcmp.eq.f32.partialorder %v797, inf
    %v860 = vsel %vm859, %v797, %v858
    %vm861 = vcmp.eq.f32.partialorder %v797, 0.0
    %v862 = vand.u32 %v797, 2147483648
    %v863 = vsel %vm861, %v862, %v860
    %v864 = vrsqrt.pop %v798
    %v865 = vmul.f32 %v798, %v864
    %vm866 = vcmp.eq.f32.partialorder %v798, inf
    %v867 = vsel %vm866, %v798, %v865
    %vm868 = vcmp.eq.f32.partialorder %v798, 0.0
    %v869 = vand.u32 %v798, 2147483648
    %v870 = vsel %vm868, %v869, %v867
    %v871 = vrsqrt.pop %v799
    %v872 = vmul.f32 %v799, %v871
    %vm873 = vcmp.eq.f32.partialorder %v799, inf
    %v874 = vsel %vm873, %v799, %v872
    %vm875 = vcmp.eq.f32.partialorder %v799, 0.0
    %v876 = vand.u32 %v799, 2147483648
    %v877 = vsel %vm875, %v876, %v874
    %v878 = vrsqrt.pop %v800
    %v879 = vmul.f32 %v800, %v878
    %vm880 = vcmp.eq.f32.partialorder %v800, inf
    %v881 = vsel %vm880, %v800, %v879
    %vm882 = vcmp.eq.f32.partialorder %v800, 0.0
    %v883 = vand.u32 %v800, 2147483648
    %v884 = vsel %vm882, %v883, %v881
    %897 = vrot.lane.b32.xlu0 %v59, 30
    %v898 = vpop.permute.xlu0 %897
    %899 = vrot.lane.b32.xlu0 %v60, 30
    %v900 = vpop.permute.xlu0 %899
    %901 = vrot.lane.b32.xlu0 %v61, 30
    %v902 = vpop.permute.xlu0 %901
    %903 = vrot.lane.b32.xlu0 %v62, 30
    %v904 = vpop.permute.xlu0 %903
    %905 = vrot.lane.b32.xlu0 %v63, 30
    %v906 = vpop.permute.xlu0 %905
    %907 = vrot.lane.b32.xlu0 %v64, 30
    %v908 = vpop.permute.xlu0 %907
    %909 = vrot.lane.b32.xlu0 %v65, 30
    %v910 = vpop.permute.xlu0 %909
    %911 = vrot.lane.b32.xlu0 %v66, 30
    %v912 = vpop.permute.xlu0 %911
    %913 = vrot.lane.b32.xlu0 %v67, 30
    %v914 = vpop.permute.xlu0 %913
    %915 = vrot.lane.b32.xlu0 %v68, 30
    %v916 = vpop.permute.xlu0 %915
    %917 = vrot.lane.b32.xlu0 %v69, 30
    %v918 = vpop.permute.xlu0 %917
    %919 = vrot.lane.b32.xlu0 %v70, 30
    %v920 = vpop.permute.xlu0 %919
    %v933 = vmul.f32 %v807, %v898
    %v934 = vmul.f32 %v814, %v900
    %v935 = vmul.f32 %v821, %v902
    %v936 = vmul.f32 %v828, %v904
    %v937 = vmul.f32 %v835, %v906
    %v938 = vmul.f32 %v842, %v908
    %v939 = vmul.f32 %v849, %v910
    %v940 = vmul.f32 %v856, %v912
    %v941 = vmul.f32 %v863, %v914
    %v942 = vmul.f32 %v870, %v916
    %v943 = vmul.f32 %v877, %v918
    %v944 = vmul.f32 %v884, %v920
    %v945 = vld [vmem:[#allocation2] sm:$0xff]
    %v946 = vld [vmem:[#allocation2 + $0x8] sm:$0xff]
    %vm947 = vcmask 261120
    %v948 = vsel %vm947, %v59, 0.0
    %v949 = vsel %vm947, %v61, 0.0
    %v950 = vadd.f32 %v948, %v949
    %v951 = vsel %vm947, %v63, 0.0
    %v952 = vadd.f32 %v950, %v951
    %v953 = vsel %vm947, %v65, 0.0
    %v954 = vadd.f32 %v952, %v953
    %v955 = vsel %vm947, %v67, 0.0
    %v956 = vadd.f32 %v954, %v955
    %v957 = vsel %vm947, %v69, 0.0
    %v958 = vadd.f32 %v956, %v957
    %v959 = vsel %vm947, %v60, 0.0
    %v960 = vsel %vm947, %v62, 0.0
    %v961 = vadd.f32 %v959, %v960
    %v962 = vsel %vm947, %v64, 0.0
    %v963 = vadd.f32 %v961, %v962
    %v964 = vsel %vm947, %v66, 0.0
    %v965 = vadd.f32 %v963, %v964
    %v966 = vsel %vm947, %v68, 0.0
    %v967 = vadd.f32 %v965, %v966
    %v968 = vsel %vm947, %v70, 0.0
    %v969 = vadd.f32 %v967, %v968
    %v970 = vadd.f32 %v945, %v958
    %v971 = vadd.f32 %v946, %v969
    %972 = vst.msk [vmem:[#allocation2] sm:$0xff] %vm947, %v970
    %973 = vst.msk [vmem:[#allocation2 + $0x8] sm:$0xff] %vm947, %v971
    %v974 = vld [vmem:[#allocation3] sm:$0xff]
    %v975 = vld [vmem:[#allocation3 + $0x8] sm:$0xff]
    %vm976 = vcmask 507120
    %v977 = vsel %vm976, %v933, 0.0
    %v978 = vsel %vm976, %v935, 0.0
    %v979 = vadd.f32 %v977, %v978
    %v980 = vsel %vm976, %v937, 0.0
    %v981 = vadd.f32 %v979, %v980
    %v982 = vsel %vm976, %v939, 0.0
    %v983 = vadd.f32 %v981, %v982
    %v984 = vsel %vm976, %v941, 0.0
    %v985 = vadd.f32 %v983, %v984
    %v986 = vsel %vm976, %v943, 0.0
    %v987 = vadd.f32 %v985, %v986
    %v988 = vsel %vm976, %v934, 0.0
    %v989 = vsel %vm976, %v936, 0.0
    %v990 = vadd.f32 %v988, %v989
    %v991 = vsel %vm976, %v938, 0.0
    %v992 = vadd.f32 %v990, %v991
    %v993 = vsel %vm976, %v940, 0.0
    %v994 = vadd.f32 %v992, %v993
    %v995 = vsel %vm976, %v942, 0.0
    %v996 = vadd.f32 %v994, %v995
    %v997 = vsel %vm976, %v944, 0.0
    %v998 = vadd.f32 %v996, %v997
    %1001 = vrot.lane.b32.xlu0 %v987, 98
    %v1002 = vpop.permute.xlu0 %1001
    %1003 = vrot.lane.b32.xlu0 %v998, 98
    %v1004 = vpop.permute.xlu0 %1003
    %v1007 = vadd.f32 %v974, %v1002
    %v1008 = vadd.f32 %v975, %v1004
    %1009 = vst.msk [vmem:[#allocation3] sm:$0xff] %vm947, %v1007
    %1010 = vst.msk [vmem:[#allocation3 + $0x8] sm:$0xff] %vm947, %v1008
    %v1011 = vld [vmem:[#allocation4] sm:$0xff]
    %v1012 = vld [vmem:[#allocation4 + $0x8] sm:$0xff]
    %v1013 = vsel %vm976, %v807, -inf
    %v1014 = vsel %vm976, %v821, -inf
    %v1015 = vsel %vm976, %v835, -inf
    %v1016 = vmax.f32 %v1013, %v1015
    %v1017 = vsel %vm976, %v849, -inf
    %v1018 = vmax.f32 %v1014, %v1017
    %v1019 = vsel %vm976, %v863, -inf
    %v1020 = vmax.f32 %v1016, %v1019
    %v1021 = vsel %vm976, %v877, -inf
    %v1022 = vmax.f32 %v1018, %v1021
    %v1023 = vmax.f32 %v1020, %v1022
    %v1024 = vsel %vm976, %v814, -inf
    %v1025 = vsel %vm976, %v828, -inf
    %v1026 = vsel %vm976, %v842, -inf
    %v1027 = vmax.f32 %v1024, %v1026
    %v1028 = vsel %vm976, %v856, -inf
    %v1029 = vmax.f32 %v1025, %v1028
    %v1030 = vsel %vm976, %v870, -inf
    %v1031 = vmax.f32 %v1027, %v1030
    %v1032 = vsel %vm976, %v884, -inf
    %v1033 = vmax.f32 %v1029, %v1032
    %v1034 = vmax.f32 %v1031, %v1033
    %1037 = vrot.lane.b32.xlu0 %v1023, 98
    %v1038 = vpop.permute.xlu0 %1037
    %1039 = vrot.lane.b32.xlu0 %v1034, 98
    %v1040 = vpop.permute.xlu0 %1039
    %v1043 = vmax.f32 %v1011, %v1038
    %v1044 = vmax.f32 %v1012, %v1040
    %1045 = vst.msk [vmem:[#allocation4] sm:$0xff] %vm947, %v1043
    %1046 = vst.msk [vmem:[#allocation4 + $0x8] sm:$0xff] %vm947, %v1044
    // Predicated region
    $region14: #{l1_loss.1} parent=1 // pred_check
      %p1047 = pneg %p12
    $region15: #{l1_loss.1} parent=1 // pred_check_branch
      %1049 = sbr.rel (%p1047) target = $region17
    $region16: #{l1_loss.1} parent=1 // pred_region
      %v1050 = vld [vmem:[#allocation2] sm:$0xff]
      %v1051 = vld [vmem:[#allocation2 + $0x8] sm:$0xff]
      %v1052 = vsel %vm947, %v1050, 0.0
      %v1053 = vsel %vm947, %v1051, 0.0
      %v1054 = vadd.f32 %v1052, %v1053
      %1055 = vadd.xlane.f32.xlu0 %v1054
      %v1056 = vpop.xlane.xlu0 %1055
      %v1057 = vrot.slane %v1056, 4
      %v1058 = vadd.f32 %v1056, %v1057
      %v1059 = vrot.slane %v1058, 2
      %v1060 = vadd.f32 %v1058, %v1059
      %v1061 = vrot.slane %v1060, 1
      %v1062 = vadd.f32 %v1060, %v1061
      %s1063 = vtos %v1062
      %s1064 = scalar_lea.smem [#allocation5], 0
      %1065 = sst [smem:[%s1064]] %s1063
      %v1066 = vld [vmem:[#allocation3] sm:$0xff]
      %v1067 = vld [vmem:[#allocation3 + $0x8] sm:$0xff]
      %v1068 = vsel %vm947, %v1066, 0.0
      %v1069 = vsel %vm947, %v1067, 0.0
      %v1070 = vadd.f32 %v1068, %v1069
      %1071 = vadd.xlane.f32.xlu0 %v1070
      %v1072 = vpop.xlane.xlu0 %1071
      %v1073 = vrot.slane %v1072, 4
      %v1074 = vadd.f32 %v1072, %v1073
      %v1075 = vrot.slane %v1074, 2
      %v1076 = vadd.f32 %v1074, %v1075
      %v1077 = vrot.slane %v1076, 1
      %v1078 = vadd.f32 %v1076, %v1077
      %s1079 = vtos %v1078
      %s1080 = scalar_lea.smem [#allocation5], 1
      %1081 = sst [smem:[%s1080]] %s1079
      %v1082 = vld [vmem:[#allocation4] sm:$0xff]
      %v1083 = vld [vmem:[#allocation4 + $0x8] sm:$0xff]
      %v1084 = vsel %vm947, %v1082, -inf
      %v1085 = vsel %vm947, %v1083, -inf
      %v1086 = vmax.f32 %v1084, %v1085
      %1087 = vmax.xlane.f32.xlu0 %v1086
      %v1088 = vpop.xlane.xlu0 %1087
      %v1089 = vrot.slane %v1088, 4
      %v1090 = vmax.f32 %v1088, %v1089
      %v1091 = vrot.slane %v1090, 2
      %v1092 = vmax.f32 %v1090, %v1091
      %v1093 = vrot.slane %v1092, 1
      %v1094 = vmax.f32 %v1092, %v1093
      %s1095 = vtos %v1094
      %s1096 = scalar_lea.smem [#allocation5], 2
      %1097 = sst [smem:[%s1096]] %s1095
    $region17: #{l1_loss.1} parent=1 // pred_fallthru
      _
    // Predicated region
    $region18: #{l1_loss.1} parent=1 // pred_check
      _
    $region19: #{l1_loss.1} parent=1 // pred_check_branch
      %1099 = sbr.rel (0) target = $region21
    $region20: #{l1_loss.1} parent=1 // pred_region
      %s1101 = ssub.s32 16, 16
      %1102 = vsyncadd [#allocation6], %s1101
      %s1104 = sshll.u32 %s2, 4
      %s1105 = int_to_ptr.vmem [resolvable:$true] %s1104
      %1107 = dma.smem_to_vmem [#allocation5], 16, %s1105, [#allocation6]
    $region21: #{l1_loss.1} parent=1 // pred_fallthru
      _
    // Predicated region
    $region22: #{l1_loss.1} parent=1 // pred_check
      _
    $region23: #{l1_loss.1} parent=1 // pred_check_branch
      %1109 = sbr.rel (0) target = $region25
    $region24: #{l1_loss.1} parent=1 // pred_region
      %1110 = dma.done [#allocation6], 16
    $region25: #{l1_loss.1} parent=1 // pred_fallthru
      _
    %1111 = sfence
    %1112 = vsyncpa [#allocation6], 1

</llo_original>
